<compile_context>
chip_gen: v5e
topology: v5e:2x2
jax: 0.10.0
libtpu: 0.0.40
codegen_flags: <defaults>
</compile_context>

<pallas_src>
import functools

import jax
import jax.numpy as jnp
from jax.experimental import pallas as pl
from jax.experimental.pallas import tpu as pltpu


def _deep_and_wide_kernel(xT_ref, w_ref, b_ref, out_ref, *, inputdim):
    D = inputdim
    xT = xT_ref[...].astype(jnp.float32)            # [2D, TB]   batch on lanes
    hsT = xT[:D, :]                                  # [D,  TB]
    htT = xT[D:, :]                                  # [D,  TB]

    # v.T[i*D + j, b] = hs[b, i] * ht[b, j]  (flattened outer product, transposed).
    # D static sublane-broadcast multiplies, concatenated along sublanes.
    vT = jnp.concatenate([hsT[i:i + 1, :] * htT for i in range(D)], axis=0)  # [D*D, TB]

    # Single fused LHS/RHS:  c.T = [[W1, 0], [0, W2]] @ [x.T ; v.T] + [b1 ; b2]
    lhsT = jnp.concatenate([xT, vT], axis=0)         # [2D + D*D, TB]
    cT = jnp.dot(w_ref[...], lhsT, preferred_element_type=jnp.float32)       # [4D, TB]
    out_ref[...] = (cT + b_ref[...]).astype(out_ref.dtype)   # one lane-dense store


def _pick_block_b(B):
    # Lane-dense batch tiles: a multiple of 128 that divides B.  Prefer >= 2
    # grid steps (v7x megacore sharding); cap the tile at 2048 rows (tiny in
    # VMEM: < 1 MiB double-buffered, fine on v5e/v6e/v7x defaults).
    for cand in (2048, 1024, 512, 256, 128):
        if B % cand == 0 and (B // cand) >= 2:
            return cand
    # Fallback: whole batch in one tile (full-extent block is always legal,
    # even if B is not a multiple of 128).
    return B


def deep_and_wide_forward(hspatial, htext, w1, b1, w2, b2, *, block_b=None):
    """Pallas implementation of DeepAndWide.forward.

    hspatial, htext : [B, D] float
    w1, b1          : Linear(2D -> 2D) weights, w1: [2D, 2D], b1: [2D]
    w2, b2          : Linear(D*D -> 2D) weights, w2: [2D, D*D], b2: [2D]
    returns         : [B, 4D] float32 (== torch.cat((g, u), dim=1))
    """
    B, D = hspatial.shape
    assert htext.shape == (B, D)
    assert w1.shape == (2 * D, 2 * D) and b1.shape == (2 * D,)
    assert w2.shape == (2 * D, D * D) and b2.shape == (2 * D,)

    K = 2 * D + D * D

    # ---- one-time layout prep (cheap XLA ops, outside the kernel) ----------
    # Single streamed input, batch on lanes:  xT = cat(hs, ht).T  -> [2D, B]
    xT = jnp.concatenate([hspatial, htext], axis=1).T.astype(jnp.float32)

    # Block-diagonal fused weight (c.T = W_fused @ [x.T ; v.T] + b_fused):
    #   rows 0:2D  = [ W1 | 0  ]
    #   rows 2D:4D = [ 0  | W2 ]
    w_fused = jnp.zeros((4 * D, K), dtype=jnp.float32)
    w_fused = w_fused.at[:2 * D, :2 * D].set(w1.astype(jnp.float32))
    w_fused = w_fused.at[2 * D:, 2 * D:].set(w2.astype(jnp.float32))
    b_fused = jnp.concatenate([b1, b2]).astype(jnp.float32).reshape(4 * D, 1)

    if block_b is None:
        block_b = _pick_block_b(B)
    else:
        assert B % block_b == 0, "block_b must divide B"
        assert block_b % 128 == 0 or block_b == B, \
            "block_b must be a multiple of 128 (lane axis) or equal B"
    grid = (pl.cdiv(B, block_b),)

    kern = functools.partial(_deep_and_wide_kernel, inputdim=D)

    # Advisory cost hint for XLA scheduling around this custom call.
    flops = 2 * B * K * (4 * D) + B * D * D
    bytes_accessed = 4 * (2 * D * B + 4 * D * K + 4 * D + 4 * D * B)

    cT = pl.pallas_call(
        kern,
        out_shape=jax.ShapeDtypeStruct((4 * D, B), jnp.float32),
        grid=grid,
        in_specs=[
            pl.BlockSpec((2 * D, block_b), lambda b: (0, b)),   # xT tile (streamed)
            pl.BlockSpec((4 * D, K), lambda b: (0, 0)),         # fused W (resident)
            pl.BlockSpec((4 * D, 1), lambda b: (0, 0)),         # fused bias (resident)
        ],
        out_specs=pl.BlockSpec((4 * D, block_b), lambda b: (0, b)),
        compiler_params=pltpu.CompilerParams(
            dimension_semantics=("parallel",)),                 # shards over v7x's 2 TCs
        cost_estimate=pl.CostEstimate(
            flops=flops, transcendentals=0, bytes_accessed=bytes_accessed),
    )(xT, w_fused, b_fused)

    # Consumers that can take the transposed [4D, B] layout directly should;
    # otherwise transpose back in XLA to match the module's [B, 4D] output.
    return cT.T


def _reference(hspatial, htext, w1, b1, w2, b2):
    x = jnp.concatenate([hspatial, htext], axis=1)
    g = x @ w1.T + b1
    v = (hspatial[:, :, None] * htext[:, None, :]).reshape(hspatial.shape[0], -1)
    u = v @ w2.T + b2
    return jnp.concatenate([g, u], axis=1)


if __name__ == "__main__":
    inputdim = 8
    batch = 512          # auto block_b=256 -> 2 lane-dense grid steps (v7x megacore)

    key = jax.random.PRNGKey(0)
    k_hs, k_ht, k_w1, k_b1, k_w2, k_b2 = jax.random.split(key, 6)

    hspatial = jax.random.normal(k_hs, (batch, inputdim), dtype=jnp.float32)
    htext = jax.random.normal(k_ht, (batch, inputdim), dtype=jnp.float32)

    # Parameters (nn.Linear-style) — deterministic synthetic init.
    w1 = 0.1 * jax.random.normal(k_w1, (2 * inputdim, 2 * inputdim), dtype=jnp.float32)
    b1 = 0.1 * jax.random.normal(k_b1, (2 * inputdim,), dtype=jnp.float32)
    w2 = 0.1 * jax.random.normal(k_w2, (2 * inputdim, inputdim * inputdim), dtype=jnp.float32)
    b2 = 0.1 * jax.random.normal(k_b2, (2 * inputdim,), dtype=jnp.float32)

    out = deep_and_wide_forward(hspatial, htext, w1, b1, w2, b2)
    out = jax.block_until_ready(out)

    ref = _reference(hspatial, htext, w1, b1, w2, b2)
    assert out.shape == (batch, 4 * inputdim)
    assert jnp.allclose(out, ref, atol=1e-4, rtol=1e-4), "mismatch vs JAX reference"

    print("KERNEL_OK")
</pallas_src>

<mosaic_0001>
module attributes {stable_mosaic.version = 11 : i64} {
  func.func @_deep_and_wide_kernel(%arg0: i32, %arg1: memref<16x256xf32, #tpu.memory_space<vmem>>, %arg2: memref<32x80xf32, #tpu.memory_space<vmem>>, %arg3: memref<32x1xf32, #tpu.memory_space<vmem>>, %arg4: memref<32x256xf32, #tpu.memory_space<vmem>>) attributes {dimension_semantics = [#tpu.dimension_semantics<parallel>], iteration_bounds = array<i64: 2>, scalar_prefetch = 0 : i64, scratch_operands = 0 : i64, tpu.core_type = #tpu.core_type<tc>, window_params = [{transform_indices = @transform_0, window_bounds = array<i64: 16, 256>}, {pipeline_mode = #tpu.pipeline_mode<synchronous>, transform_indices = @transform_1, window_bounds = array<i64: 32, 80>}, {pipeline_mode = #tpu.pipeline_mode<synchronous>, transform_indices = @transform_2, window_bounds = array<i64: 32, 1>}, {transform_indices = @transform_3, window_bounds = array<i64: 32, 256>}]} {
    %c0 = arith.constant 0 : index
    %c0_0 = arith.constant 0 : index
    %0 = vector.load %arg1[%c0, %c0_0] : memref<16x256xf32, #tpu.memory_space<vmem>>, vector<16x256xf32>
    %1 = vector.extract_strided_slice %0 {offsets = [0, 0], sizes = [8, 256], strides = [1, 1]} : vector<16x256xf32> to vector<8x256xf32>
    %2 = vector.extract_strided_slice %0 {offsets = [8, 0], sizes = [8, 256], strides = [1, 1]} : vector<16x256xf32> to vector<8x256xf32>
    %3 = vector.extract_strided_slice %1 {offsets = [0, 0], sizes = [1, 256], strides = [1, 1]} : vector<8x256xf32> to vector<1x256xf32>
    %4 = vector.broadcast %3 : vector<1x256xf32> to vector<8x256xf32>
    %5 = arith.mulf %4, %2 : vector<8x256xf32>
    %6 = vector.extract_strided_slice %1 {offsets = [1, 0], sizes = [1, 256], strides = [1, 1]} : vector<8x256xf32> to vector<1x256xf32>
    %7 = vector.broadcast %6 : vector<1x256xf32> to vector<8x256xf32>
    %8 = arith.mulf %7, %2 : vector<8x256xf32>
    %9 = vector.extract_strided_slice %1 {offsets = [2, 0], sizes = [1, 256], strides = [1, 1]} : vector<8x256xf32> to vector<1x256xf32>
    %10 = vector.broadcast %9 : vector<1x256xf32> to vector<8x256xf32>
    %11 = arith.mulf %10, %2 : vector<8x256xf32>
    %12 = vector.extract_strided_slice %1 {offsets = [3, 0], sizes = [1, 256], strides = [1, 1]} : vector<8x256xf32> to vector<1x256xf32>
    %13 = vector.broadcast %12 : vector<1x256xf32> to vector<8x256xf32>
    %14 = arith.mulf %13, %2 : vector<8x256xf32>
    %15 = vector.extract_strided_slice %1 {offsets = [4, 0], sizes = [1, 256], strides = [1, 1]} : vector<8x256xf32> to vector<1x256xf32>
    %16 = vector.broadcast %15 : vector<1x256xf32> to vector<8x256xf32>
    %17 = arith.mulf %16, %2 : vector<8x256xf32>
    %18 = vector.extract_strided_slice %1 {offsets = [5, 0], sizes = [1, 256], strides = [1, 1]} : vector<8x256xf32> to vector<1x256xf32>
    %19 = vector.broadcast %18 : vector<1x256xf32> to vector<8x256xf32>
    %20 = arith.mulf %19, %2 : vector<8x256xf32>
    %21 = vector.extract_strided_slice %1 {offsets = [6, 0], sizes = [1, 256], strides = [1, 1]} : vector<8x256xf32> to vector<1x256xf32>
    %22 = vector.broadcast %21 : vector<1x256xf32> to vector<8x256xf32>
    %23 = arith.mulf %22, %2 : vector<8x256xf32>
    %24 = vector.extract_strided_slice %1 {offsets = [7, 0], sizes = [1, 256], strides = [1, 1]} : vector<8x256xf32> to vector<1x256xf32>
    %25 = vector.broadcast %24 : vector<1x256xf32> to vector<8x256xf32>
    %26 = arith.mulf %25, %2 : vector<8x256xf32>
    %27 = tpu.concatenate %5, %8, %11, %14, %17, %20, %23, %26 in 0 : vector<8x256xf32>, vector<8x256xf32>, vector<8x256xf32>, vector<8x256xf32>, vector<8x256xf32>, vector<8x256xf32>, vector<8x256xf32>, vector<8x256xf32> -> vector<64x256xf32>
    %28 = tpu.concatenate %0, %27 in 0 : vector<16x256xf32>, vector<64x256xf32> -> vector<80x256xf32>
    %c0_1 = arith.constant 0 : index
    %c0_2 = arith.constant 0 : index
    %29 = vector.load %arg2[%c0_1, %c0_2] : memref<32x80xf32, #tpu.memory_space<vmem>>, vector<32x80xf32>
    %cst = arith.constant dense<0.000000e+00> : vector<32x256xf32>
    %30 = tpu.matmul %29, %28, %cst {dimension_numbers = #tpu.dot_dimension_numbers<[1], [0], [0], [1], [0, 0, 1, 1], [], []>} : vector<32x80xf32>, vector<80x256xf32>, vector<32x256xf32> -> vector<32x256xf32>
    %c0_3 = arith.constant 0 : index
    %c0_4 = arith.constant 0 : index
    %31 = vector.load %arg3[%c0_3, %c0_4] : memref<32x1xf32, #tpu.memory_space<vmem>>, vector<32x1xf32>
    %32 = vector.broadcast %31 : vector<32x1xf32> to vector<32x256xf32>
    %33 = arith.addf %30, %32 : vector<32x256xf32>
    %c0_5 = arith.constant 0 : index
    %c0_6 = arith.constant 0 : index
    %34 = vector.load %arg4[%c0_5, %c0_6] : memref<32x256xf32, #tpu.memory_space<vmem>>, vector<32x256xf32>
    tpu.vector_store %arg4[%c0_5, %c0_6], %33 {strides = array<i32>} : memref<32x256xf32, #tpu.memory_space<vmem>>, vector<32x256xf32>,
    return
  }
  func.func @transform_0(%arg0: i32) -> (i32, i32) {
    %c0_i32 = arith.constant 0 : i32
    %c0_i32_0 = arith.constant 0 : i32
    return %c0_i32, %arg0 : i32, i32
  }
  func.func @transform_1(%arg0: i32) -> (i32, i32) {
    %c0_i32 = arith.constant 0 : i32
    %c0_i32_0 = arith.constant 0 : i32
    %c0_i32_1 = arith.constant 0 : i32
    return %c0_i32, %c0_i32_0 : i32, i32
  }
  func.func @transform_2(%arg0: i32) -> (i32, i32) {
    %c0_i32 = arith.constant 0 : i32
    %c0_i32_0 = arith.constant 0 : i32
    %c0_i32_1 = arith.constant 0 : i32
    return %c0_i32, %c0_i32_0 : i32, i32
  }
  func.func @transform_3(%arg0: i32) -> (i32, i32) {
    %c0_i32 = arith.constant 0 : i32
    %c0_i32_0 = arith.constant 0 : i32
    return %c0_i32, %arg0 : i32, i32
  }
}

</mosaic_0001>

<llo_original>
// kernel: tpu_custom_call.1
$region0: #{tpu_custom_call.1}
  #allocation0 [shape = 'u32[]', space=smem, size = 0x4, offset = 0x4, fixed_abs, tag = 'smem constant byte address 0x4 - core index']
  #allocation1 [shape = 'u32[72,128]{1,0:T(1,128)}', space=vmem, size = 0x9000, scoped, tag = 'internal scratch']
  %s0 = inlined_call_operand.hbm [shape: f32[16,512], index: 0, kind: input, shape index: {}]
  %s1 = inlined_call_operand.vmem [shape: f32[32,80], index: 1, kind: input, shape index: {}]
  %s2 = inlined_call_operand.vmem [shape: f32[32,1], index: 2, kind: input, shape index: {}]
  %s3 = inlined_call_operand.hbm [shape: f32[32,512], index: 3, kind: output, shape index: {}]
  %s4 = sld [smem:[#allocation0]]
  $region49: #{tpu_custom_call.1} parent=0
    _
  %s6 = ssub.s32 1, %s4
  %s7 = scalar_select 0, %s6, %s4
  $region1: #{tpu_custom_call.1} parent=0
    #allocation2 [shape = 'u8[32768]{0}', space=vmem, size = 0x8000, scoped, tag = 'input window, operand 0']
    #allocation3 [shape = 's32[2]{0}', space=sflag, size = 0x8, scoped, tag = 'scoped memory for tpu_custom_call.1']
    #allocation4 [shape = 's32[2]{0}', space=sflag, size = 0x8, scoped, tag = 'scoped memory for tpu_custom_call.1']
    #allocation5 [shape = 'u8[65536]{0}', space=vmem, size = 0x10000, scoped, tag = 'output window, operand 0']
    %8 = vsyncpa [#allocation3], 0
    %s9 = scalar_lea.sflag [#allocation3], 1
    %10 = vsyncpa %s9, 0
    %11 = vsyncpa [#allocation4], 0
    %s12 = scalar_lea.sflag [#allocation4], 1
    %13 = vsyncpa %s12, 0
    loop: start=0, step=1, limit=4
    $region2: #{tpu_custom_call.1} parent=1 // loop_pre_header
      _
    $region3: #{tpu_custom_call.1} parent=1 // loop_header
      %s15 = sphi 0, %s19
      %p16 = scmp.ge.s32.totalorder %s15, 4
      %s25 = sphi 0, %s27
      %s28 = sphi 0, %s25
      %s29 = sphi 0, %s28
      %s45 = sphi 0, %s29
      %s49 = sphi 0, %s49
      %s51 = sphi 0, %s49
      %s52 = sphi 0, %s51
      %s66 = sphi 0, %s52
      %s70 = sphi 0, %s70
      %s72 = sphi 0, %s70
      %s73 = sphi 0, %s72
      %s87 = sphi 0, %s73
      %s93 = sphi 0, %s95
      %s96 = sphi 0, %s93
      %s97 = sphi 0, %s96
      %s113 = sphi 0, %s97
    $region4: #{tpu_custom_call.1} parent=1 // loop_header_branch
      %18 = sbr.rel (%p16) target = $region8
    $region5: #{tpu_custom_call.1} parent=1 // loop_body
      %s20 = ssub.s32 %s15, 1
      %s21 = ssub.s32 %s15, 2
      %s22 = sadd.s32 %s15, 1
      %s23 = ssub.s32 %s15, %s22
      %p24 = scmp.eq.s32.totalorder %s23, 0
      %s26 = sadd.s32 %s25, 1
      %s27 = scalar_select %p24, %s25, %s26
      %p30 = pneg %p24
      %p31 = scmp.eq.s32.totalorder %s15, 1
      %p32 = por %p30, %p31
      %p33 = scmp.ne.s32.totalorder %s25, %s28
      %p34 = scmp.eq.s32.totalorder %s15, 0
      %p35 = por %p33, %p34
      %p36 = scmp.ne.s32.totalorder %s25, %s28
      %p37 = scmp.eq.s32.totalorder %s20, 1
      %p38 = por %p36, %p37
      %p39 = scmp.ne.s32.totalorder %s28, %s29
      %p40 = scmp.eq.s32.totalorder %s20, 0
      %p41 = por %p39, %p40
      %p42 = scmp.ne.s32.totalorder %s28, %s29
      %p43 = scmp.eq.s32.totalorder %s21, 1
      %p44 = por %p42, %p43
      %p46 = scmp.ne.s32.totalorder %s29, %s45
      %p47 = scmp.eq.s32.totalorder %s21, 0
      %p48 = por %p46, %p47
      %s50 = sadd.s32 %s49, 1
      %p53 = scmp.eq.s32.totalorder %s15, 1
      %p54 = scmp.ne.s32.totalorder %s49, %s51
      %p55 = scmp.eq.s32.totalorder %s15, 0
      %p56 = por %p54, %p55
      %p57 = scmp.ne.s32.totalorder %s49, %s51
      %p58 = scmp.eq.s32.totalorder %s20, 1
      %p59 = por %p57, %p58
      %p60 = scmp.ne.s32.totalorder %s51, %s52
      %p61 = scmp.eq.s32.totalorder %s20, 0
      %p62 = por %p60, %p61
      %p63 = scmp.ne.s32.totalorder %s51, %s52
      %p64 = scmp.eq.s32.totalorder %s21, 1
      %p65 = por %p63, %p64
      %p67 = scmp.ne.s32.totalorder %s52, %s66
      %p68 = scmp.eq.s32.totalorder %s21, 0
      %p69 = por %p67, %p68
      %s71 = sadd.s32 %s70, 1
      %p74 = scmp.eq.s32.totalorder %s15, 1
      %p75 = scmp.ne.s32.totalorder %s70, %s72
      %p76 = scmp.eq.s32.totalorder %s15, 0
      %p77 = por %p75, %p76
      %p78 = scmp.ne.s32.totalorder %s70, %s72
      %p79 = scmp.eq.s32.totalorder %s20, 1
      %p80 = por %p78, %p79
      %p81 = scmp.ne.s32.totalorder %s72, %s73
      %p82 = scmp.eq.s32.totalorder %s20, 0
      %p83 = por %p81, %p82
      %p84 = scmp.ne.s32.totalorder %s72, %s73
      %p85 = scmp.eq.s32.totalorder %s21, 1
      %p86 = por %p84, %p85
      %p88 = scmp.ne.s32.totalorder %s73, %s87
      %p89 = scmp.eq.s32.totalorder %s21, 0
      %p90 = por %p88, %p89
      %s91 = ssub.s32 %s15, %s22
      %p92 = scmp.eq.s32.totalorder %s91, 0
      %s94 = sadd.s32 %s93, 1
      %s95 = scalar_select %p92, %s93, %s94
      %p98 = pneg %p92
      %p99 = scmp.eq.s32.totalorder %s15, 1
      %p100 = por %p98, %p99
      %p101 = scmp.ne.s32.totalorder %s93, %s96
      %p102 = scmp.eq.s32.totalorder %s15, 0
      %p103 = por %p101, %p102
      %p104 = scmp.ne.s32.totalorder %s93, %s96
      %p105 = scmp.eq.s32.totalorder %s20, 1
      %p106 = por %p104, %p105
      %p107 = scmp.ne.s32.totalorder %s96, %s97
      %p108 = scmp.eq.s32.totalorder %s20, 0
      %p109 = por %p107, %p108
      %p110 = scmp.ne.s32.totalorder %s96, %s97
      %p111 = scmp.eq.s32.totalorder %s21, 1
      %p112 = por %p110, %p111
      %p114 = scmp.ne.s32.totalorder %s97, %s113
      %p115 = scmp.eq.s32.totalorder %s21, 0
      %p116 = por %p114, %p115
      %p117 = scmp.le.s32.totalorder 1, %s15
      %p118 = scmp.lt.s32.totalorder %s15, 3
      %p119 = pnand %p117, %p118
      %p120 = pneg %p119
      // Predicated region
      $region9: #{tpu_custom_call.1} parent=5 // pred_check
        _
      $region10: #{tpu_custom_call.1} parent=5 // pred_check_branch
        %122 = sbr.rel (%p119) target = $region12
      $region11: #{tpu_custom_call.1} parent=5 // pred_region
        %s123 = ssub.s32 %s15, 1
        // Predicated region
        $region13: #{tpu_custom_call.1} parent=11 // pred_check
          %p124 = pneg %p62
        $region14: #{tpu_custom_call.1} parent=11 // pred_check_branch
          %126 = sbr.rel (%p124) target = $region16
        $region15: #{tpu_custom_call.1} parent=11 // pred_region
          _
        $region16: #{tpu_custom_call.1} parent=11 // pred_fallthru
          _
        // Predicated region
        $region17: #{tpu_custom_call.1} parent=11 // pred_check
          %p127 = pneg %p83
        $region18: #{tpu_custom_call.1} parent=11 // pred_check_branch
          %129 = sbr.rel (%p127) target = $region20
        $region19: #{tpu_custom_call.1} parent=11 // pred_region
          _
        $region20: #{tpu_custom_call.1} parent=11 // pred_fallthru
          _
      $region12: #{tpu_custom_call.1} parent=5 // pred_fallthru
        _
      %p130 = scmp.lt.s32.totalorder %s15, 2
      // Predicated region
      $region21: #{tpu_custom_call.1} parent=5 // pred_check
        %p131 = pneg %p130
      $region22: #{tpu_custom_call.1} parent=5 // pred_check_branch
        %133 = sbr.rel (%p131) target = $region24
      $region23: #{tpu_custom_call.1} parent=5 // pred_region
        // Predicated region
        $region25: #{tpu_custom_call.1} parent=23 // pred_check
          %p134 = pneg %p35
        $region26: #{tpu_custom_call.1} parent=23 // pred_check_branch
          %136 = sbr.rel (%p134) target = $region28
        $region27: #{tpu_custom_call.1} parent=23 // pred_region
          %s137 = sand.u32 %s25, 1
          %s138 = scalar_lea.sflag [#allocation3], %s137
          %s139 = sand.u32 %s25, 1
          %s140 = smul.addr %s139, 32
          %s141 = scalar_lea.vmem [#allocation2], %s140
          %s142 = smul.u32 2, %s15
          %144 = vsyncadd %s138, 0
          %s145 = smul.addr %s142, 8
          %s146 = scalar_lea.hbm %s0, %s145
          %s147 = sshll.u32 %s146, 4
          %s148 = int_to_ptr.hbm [resolvable:$true] %s147
          %s149 = sshll.u32 %s141, 4
          %s150 = int_to_ptr.vmem [resolvable:$true] %s149
          %155 = dma.hbm_to_vmem [thread:$0]  %s148, 512, %s150, %s138, 512, 256, 16
        $region28: #{tpu_custom_call.1} parent=23 // pred_fallthru
          _
      $region24: #{tpu_custom_call.1} parent=5 // pred_fallthru
        _
      %p156 = scmp.le.s32.totalorder 1, %s15
      %p157 = scmp.lt.s32.totalorder %s15, 3
      %p158 = pnand %p156, %p157
      %p159 = pneg %p158
      // Predicated region
      $region29: #{tpu_custom_call.1} parent=5 // pred_check
        _
      $region30: #{tpu_custom_call.1} parent=5 // pred_check_branch
        %161 = sbr.rel (%p158) target = $region32
      $region31: #{tpu_custom_call.1} parent=5 // pred_region
        %s162 = ssub.s32 %s15, 1
        %s163 = sand.u32 %s28, 1
        %s164 = scalar_lea.sflag [#allocation3], %s163
        %s165 = sand.u32 %s28, 1
        %s166 = smul.addr %s165, 32
        %s167 = scalar_lea.vmem [#allocation2], %s166
        // Predicated region
        $region33: #{tpu_custom_call.1} parent=31 // pred_check
          %p168 = pneg %p41
        $region34: #{tpu_custom_call.1} parent=31 // pred_check_branch
          %170 = sbr.rel (%p168) target = $region36
        $region35: #{tpu_custom_call.1} parent=31 // pred_region
          %172 = dma.done %s164, 512
        $region36: #{tpu_custom_call.1} parent=31 // pred_fallthru
          _
        %s173 = sand.u32 %s28, 1
        %s174 = scalar_lea.sflag [#allocation3], %s173
        %s175 = sand.u32 %s28, 1
        %s176 = smul.addr %s175, 32
        %s177 = scalar_lea.vmem [#allocation2], %s176
        %p178 = pneg %p41
        %p179 = pneg %p38
        %p180 = pneg %p62
        %p181 = pneg %p59
        %p182 = pneg %p83
        %p183 = pneg %p80
        %p184 = pneg %p109
        %p185 = pneg %p106
        %s186 = sand.u32 %s96, 1
        %s187 = scalar_lea.sflag [#allocation4], %s186
        %s188 = sand.u32 %s96, 1
        %s189 = smul.addr %s188, 64
        %s190 = scalar_lea.vmem [#allocation5], %s189
        %s191 = smul.u32 2, %s20
        %s192 = smul.u32 2, %s20
        %v193 = vld [vmem:[%s167] sm:$0xff]
        %v194 = vld [vmem:[%s167 + $0x8] sm:$0xff]
        %v195 = vld [vmem:[%s167 + $0x10] sm:$0xff]
        %v196 = vld [vmem:[%s167 + $0x18] sm:$0xff]
        %v197 = vperm.slane %v193, 0
        %v198 = vperm.slane %v194, 0
        %v199 = vmul.f32 %v197, %v195
        %v200 = vmul.f32 %v198, %v196
        %v201 = vperm.slane %v193, 1
        %v202 = vperm.slane %v194, 1
        %v203 = vmul.f32 %v201, %v195
        %v204 = vmul.f32 %v202, %v196
        %v205 = vperm.slane %v193, 2
        %v206 = vperm.slane %v194, 2
        %v207 = vmul.f32 %v205, %v195
        %v208 = vmul.f32 %v206, %v196
        %v209 = vperm.slane %v193, 3
        %v210 = vperm.slane %v194, 3
        %v211 = vmul.f32 %v209, %v195
        %v212 = vmul.f32 %v210, %v196
        %v213 = vperm.slane %v193, 4
        %v214 = vperm.slane %v194, 4
        %v215 = vmul.f32 %v213, %v195
        %v216 = vmul.f32 %v214, %v196
        %v217 = vperm.slane %v193, 5
        %v218 = vperm.slane %v194, 5
        %v219 = vmul.f32 %v217, %v195
        %v220 = vmul.f32 %v218, %v196
        %v221 = vperm.slane %v193, 6
        %v222 = vperm.slane %v194, 6
        %v223 = vmul.f32 %v221, %v195
        %v224 = vmul.f32 %v222, %v196
        %v225 = vperm.slane %v193, 7
        %v226 = vperm.slane %v194, 7
        %v227 = vmul.f32 %v225, %v195
        %v228 = vmul.f32 %v226, %v196
        %v229 = vld [vmem:[%s1] sm:$0xff]
        %v230 = vld [vmem:[%s1 + $0x8] sm:$0xff]
        %v231 = vld [vmem:[%s1 + $0x10] sm:$0xff]
        %v232 = vld [vmem:[%s1 + $0x18] sm:$0xff]
        %v233 = vld [vmem:[%s2] sm:$0xff]
        %v234 = vld [vmem:[%s2 + $0x8] sm:$0xff]
        %v235 = vld [vmem:[%s2 + $0x10] sm:$0xff]
        %v236 = vld [vmem:[%s2 + $0x18] sm:$0xff]
        %238 = vset.pattern.permute.xlu0 0
        %239 = vperm.xlu0 %238, %v233
        %v240 = vpop.permute.xlu0 %239
        %243 = vset.pattern.permute.xlu0 0
        %244 = vperm.xlu0 %243, %v234
        %v245 = vpop.permute.xlu0 %244
        %248 = vset.pattern.permute.xlu0 0
        %249 = vperm.xlu0 %248, %v235
        %v250 = vpop.permute.xlu0 %249
        %253 = vset.pattern.permute.xlu0 0
        %254 = vperm.xlu0 %253, %v236
        %v255 = vpop.permute.xlu0 %254
        %vm257 = vcmask 654336
        %v259 = vsel %vm257, %v229, 0
        %v262 = vsel %vm257, %v230, 0
        %v265 = vsel %vm257, %v231, 0
        %v268 = vsel %vm257, %v232, 0
        %270 = vmatpush.msra.mxu0 0.0
        %271 = vmatpush.msra.mxu0 0.0
        %272 = vmatpush.msra.mxu0 0.0
        %273 = vmatpush.msra.mxu0 0.0
        %274 = vmatpush.msra.mxu0 0.0
        %275 = vmatpush.msra.mxu0 0.0
        %276 = vmatpush.msra.mxu0 %v227
        %277 = vmatpush.msra.mxu0 %v223
        %278 = vmatpush.msra.mxu0 %v219
        %279 = vmatpush.msra.mxu0 %v215
        %280 = vmatpush.msra.mxu0 %v211
        %281 = vmatpush.msra.mxu0 %v207
        %282 = vmatpush.msra.mxu0 %v203
        %283 = vmatpush.msra.mxu0 %v199
        %284 = vmatpush.msra.mxu0 %v195
        %285 = vmatpush.msra.mxu0 %v193
        %286 = vmatmul.f32.gmra.mxu0 %v259
        %v287 = vpop.f32.mrf.mxu0
        %v288 = vadd.f32 %v240, %v287
        %289 = vmatmul.f32.gmra.mxu0 %v262
        %v290 = vpop.f32.mrf.mxu0
        %v291 = vadd.f32 %v245, %v290
        %292 = vmatmul.f32.gmra.mxu0 %v265
        %v293 = vpop.f32.mrf.mxu0
        %v294 = vadd.f32 %v250, %v293
        %295 = vmatmul.f32.gmra.mxu0 %v268
        %v296 = vpop.f32.mrf.mxu0
        %v297 = vadd.f32 %v255, %v296
        %298 = vdwg.mxu0
        %299 = vmatpush.msra.mxu0 0.0
        %300 = vmatpush.msra.mxu0 0.0
        %301 = vmatpush.msra.mxu0 0.0
        %302 = vmatpush.msra.mxu0 0.0
        %303 = vmatpush.msra.mxu0 0.0
        %304 = vmatpush.msra.mxu0 0.0
        %305 = vmatpush.msra.mxu0 %v228
        %306 = vmatpush.msra.mxu0 %v224
        %307 = vmatpush.msra.mxu0 %v220
        %308 = vmatpush.msra.mxu0 %v216
        %309 = vmatpush.msra.mxu0 %v212
        %310 = vmatpush.msra.mxu0 %v208
        %311 = vmatpush.msra.mxu0 %v204
        %312 = vmatpush.msra.mxu0 %v200
        %313 = vmatpush.msra.mxu0 %v196
        %314 = vmatpush.msra.mxu0 %v194
        %315 = vmatmul.f32.gmra.mxu0 %v259
        %v316 = vpop.f32.mrf.mxu0
        %v317 = vadd.f32 %v240, %v316
        %318 = vmatmul.f32.gmra.mxu0 %v262
        %v319 = vpop.f32.mrf.mxu0
        %v320 = vadd.f32 %v245, %v319
        %321 = vmatmul.f32.gmra.mxu0 %v265
        %v322 = vpop.f32.mrf.mxu0
        %v323 = vadd.f32 %v250, %v322
        %324 = vmatmul.f32.gmra.mxu0 %v268
        %v325 = vpop.f32.mrf.mxu0
        %v326 = vadd.f32 %v255, %v325
        %327 = vdwg.mxu0
        %328 = vst [vmem:[%s190] sm:$0xff] %v288
        %329 = vst [vmem:[%s190 + $0x8] sm:$0xff] %v317
        %330 = vst [vmem:[%s190 + $0x10] sm:$0xff] %v291
        %331 = vst [vmem:[%s190 + $0x18] sm:$0xff] %v320
        %332 = vst [vmem:[%s190 + $0x20] sm:$0xff] %v294
        %333 = vst [vmem:[%s190 + $0x28] sm:$0xff] %v323
        %334 = vst [vmem:[%s190 + $0x30] sm:$0xff] %v297
        %335 = vst [vmem:[%s190 + $0x38] sm:$0xff] %v326
        %s336 = sand.u32 %s96, 1
        %s337 = scalar_lea.sflag [#allocation4], %s336
        %s338 = sand.u32 %s96, 1
        %s339 = smul.addr %s338, 64
        %s340 = scalar_lea.vmem [#allocation5], %s339
        // Predicated region
        $region37: #{tpu_custom_call.1} parent=31 // pred_check
          %p341 = pneg %p106
        $region38: #{tpu_custom_call.1} parent=31 // pred_check_branch
          %343 = sbr.rel (%p341) target = $region40
        $region39: #{tpu_custom_call.1} parent=31 // pred_region
          %s344 = smul.u32 2, %s20
          %346 = vsyncadd %s337, 0
          %s347 = smul.addr %s344, 8
          %s348 = scalar_lea.hbm %s3, %s347
          %s349 = sshll.u32 %s340, 4
          %s350 = int_to_ptr.vmem [resolvable:$true] %s349
          %s351 = sshll.u32 %s348, 4
          %s352 = int_to_ptr.hbm [resolvable:$true] %s351
          %357 = dma.vmem_to_hbm [thread:$0]  %s350, 1024, %s352, %s337, 256, 512, 16
        $region40: #{tpu_custom_call.1} parent=31 // pred_fallthru
          _
      $region32: #{tpu_custom_call.1} parent=5 // pred_fallthru
        _
      %p358 = scmp.le.s32.totalorder 2, %s15
      // Predicated region
      $region41: #{tpu_custom_call.1} parent=5 // pred_check
        %p359 = pneg %p358
      $region42: #{tpu_custom_call.1} parent=5 // pred_check_branch
        %361 = sbr.rel (%p359) target = $region44
      $region43: #{tpu_custom_call.1} parent=5 // pred_region
        %s362 = ssub.s32 %s15, 2
        // Predicated region
        $region45: #{tpu_custom_call.1} parent=43 // pred_check
          %p363 = pneg %p112
        $region46: #{tpu_custom_call.1} parent=43 // pred_check_branch
          %365 = sbr.rel (%p363) target = $region48
        $region47: #{tpu_custom_call.1} parent=43 // pred_region
          %s366 = sand.u32 %s97, 1
          %s367 = scalar_lea.sflag [#allocation4], %s366
          %s368 = sand.u32 %s97, 1
          %s369 = smul.addr %s368, 64
          %s370 = scalar_lea.vmem [#allocation5], %s369
          %372 = dma.done %s367, 1024
        $region48: #{tpu_custom_call.1} parent=43 // pred_fallthru
          _
      $region44: #{tpu_custom_call.1} parent=5 // pred_fallthru
        _
    $region6: #{tpu_custom_call.1} parent=1 // loop_footer
      %s19 = sadd.s32 1, %s15
    $region7: #{tpu_custom_call.1} parent=1 // loop_footer_branch
      %14 = sbr.rel target = $region3
    $region8: #{tpu_custom_call.1} parent=1 // loop_exit
      _
    %373 = vsyncpa [#allocation3], 1
    %s374 = scalar_lea.sflag [#allocation3], 1
    %375 = vsyncpa %s374, 1
    %376 = vsyncpa [#allocation4], 1
    %s377 = scalar_lea.sflag [#allocation4], 1
    %378 = vsyncpa %s377, 1

</llo_original>
